<compile_context>
chip_gen: v5e
topology: v5e:2x2
jax: 0.10.0
libtpu: 0.0.40
codegen_flags: <defaults>
</compile_context>

<pallas_src>
import functools

import jax
import jax.numpy as jnp
from jax import lax
from jax.experimental import pallas as pl
from jax.experimental.pallas import tpu as pltpu


# ----------------------------- kernels ------------------------------------ #

def _stats_kernel(x_ref, sum_out_ref, sq_out_ref, acc_sum_ref, acc_sq_ref):
    """Pass 1: per-channel sum / sum-of-squares over (N_blk, C_blk, T) tiles.

    grid = (split, C-blocks, N-steps, HW-steps); the last two axes are the reduction.
    Accumulators live in (C_blk, 1) f32 VMEM scratch (resident across the reduction);
    the partial totals are emitted once per (split, C-block) at the last step.
    """
    n = pl.program_id(2)
    t = pl.program_id(3)
    is_first = jnp.logical_and(n == 0, t == 0)
    is_last = jnp.logical_and(n == pl.num_programs(2) - 1,
                              t == pl.num_programs(3) - 1)

    @pl.when(is_first)
    def _init():
        acc_sum_ref[...] = jnp.zeros_like(acc_sum_ref)
        acc_sq_ref[...] = jnp.zeros_like(acc_sq_ref)

    n_blk = x_ref.shape[0]
    s = acc_sum_ref[...]                       # (C_blk, 1) f32
    q = acc_sq_ref[...]
    # Static loop over the (small) N_blk slices keeps temporaries bounded to one slice;
    # the lane (minor-axis) reduction per slice is mostly VPU adds + one XLU reduce per
    # 8-channel group, so the pass stays HBM-bound.
    for nb in range(n_blk):
        xs = x_ref[nb].astype(jnp.float32)     # (C_blk, T)
        s = s + jnp.sum(xs, axis=-1, keepdims=True)
        q = q + jnp.sum(xs * xs, axis=-1, keepdims=True)
    acc_sum_ref[...] = s
    acc_sq_ref[...] = q

    @pl.when(is_last)
    def _emit():
        sum_out_ref[...] = s
        sq_out_ref[...] = q


def _normalize_kernel(x_ref, scale_ref, shift_ref, y_ref):
    """Pass 2: y = x * scale + shift with per-channel (C_blk, 1) scale/shift broadcast.

    scale/shift arrive pre-cast to the compute dtype (bf16 when x is bf16, else f32).
    """
    x = x_ref[...].astype(scale_ref.dtype)                     # (N_blk, C_blk, T)
    y_ref[...] = (x * scale_ref[...] + shift_ref[...]).astype(y_ref.dtype)


# ----------------------------- tiling helpers ------------------------------ #

@functools.lru_cache(maxsize=None)
def _vmem_limit_bytes():
    """Generation-aware scoped-VMEM limit: half of physical, capped at 64 MiB
    (v5e/v6e: 128 MiB physical -> 64 MiB; v7x: 64 MiB physical -> 32 MiB)."""
    try:
        cap = int(pltpu.get_tpu_info().vmem_capacity_bytes)
    except Exception:
        cap = 64 * 1024 * 1024
    return max(16 << 20, min(cap // 2, 64 << 20))


def _block_bytes(n_blk, c_blk, t):
    """f32 VMEM footprint of one (n_blk, c_blk, t) block, including (8,128) padding."""
    c_pad = ((c_blk + 7) // 8) * 8
    t_pad = ((t + 127) // 128) * 128
    return n_blk * c_pad * t_pad * 4


def _pick_c_block(c):
    # Channels live on sublanes.  Full-C blocks when C is small; otherwise a multiple of
    # 8 capped at 32 to bound vreg pressure in the accumulation.
    if c <= 32:
        return c
    for cb in (32, 16, 8):
        if c % cb == 0:
            return cb
    return c                                   # odd C with no multiple-of-8 divisor


def _pick_hw_tile(hw, c_blk, budget):
    if hw % 128 != 0:
        # Full extent is the only legal lane width; realistic feature maps keep this small.
        return hw
    for m in range(hw // 128, 0, -1):          # largest multiple-of-128 divisor that fits
        t = 128 * m
        if hw % t == 0 and _block_bytes(1, c_blk, t) <= budget:
            return t
    return 128


def _pick_n_block(n, c_blk, t, budget):
    for nb in range(n, 0, -1):                 # largest divisor of N that fits the budget
        if n % nb == 0 and _block_bytes(nb, c_blk, t) <= budget:
            return nb
    return 1


# ----------------------------- wrapper ------------------------------------ #

def running_mean_and_var_forward(x, run_mean, run_var, run_count, training=True,
                                 block_budget_bytes=None):
    """x: (N, C, H, W) float (NCHW, as in PyTorch).
       run_mean, run_var: (1, C, 1, 1);  run_count: () f32.
       Returns (y, new_mean, new_var, new_count)."""
    N, C, H, W = x.shape
    HW = H * W
    L = N * HW

    vmem_limit = _vmem_limit_bytes()
    budget = block_budget_bytes or max(1 << 20, min(vmem_limit // 8, 8 << 20))

    C_blk = _pick_c_block(C)
    T = _pick_hw_tile(HW, C_blk, budget)
    N_blk = _pick_n_block(N, C_blk, T, budget)

    n_c = C // C_blk
    n_n = N // N_blk
    n_t = HW // T

    # Prefer >=4 grid steps so the software pipeline overlaps DMA with compute and the
    # megacore / split axes have work for both TensorCores, without dropping below ~1 MiB
    # blocks (per-step overhead ~0.35 us stays negligible).
    while (n_c * n_n * n_t) < 4 and N_blk % 2 == 0 and \
            _block_bytes(N_blk // 2, C_blk, T) >= (1 << 20):
        N_blk //= 2
        n_n = N // N_blk

    x3 = x.reshape(N, C, HW)                            # free reshape, no data movement
    old_mean = run_mean.reshape(C).astype(jnp.float32)
    old_var = run_var.reshape(C).astype(jnp.float32)

    if training:
        # Split the (N-step, HW-step) reduction range in two (leading "parallel" axis) so
        # v7x's two TensorCores both reduce even when n_c == 1 (e.g. C == 3).
        if n_n % 2 == 0:
            n_split, g_n, g_t = 2, n_n // 2, n_t
            x_idx = lambda s, c, n, t, _h=n_n // 2: (s * _h + n, c, t)
        elif n_t % 2 == 0:
            n_split, g_n, g_t = 2, n_n, n_t // 2
            x_idx = lambda s, c, n, t, _h=n_t // 2: (n, c, s * _h + t)
        else:
            n_split, g_n, g_t = 1, n_n, n_t
            x_idx = lambda s, c, n, t: (n, c, t)

        part_spec = pl.BlockSpec((None, C_blk, 1), lambda s, c, n, t: (s, c, 0))
        part_sum, part_sq = pl.pallas_call(
            _stats_kernel,
            grid=(n_split, n_c, g_n, g_t),
            in_specs=[pl.BlockSpec((N_blk, C_blk, T), x_idx)],
            out_specs=[part_spec, part_spec],
            out_shape=[jax.ShapeDtypeStruct((n_split, C, 1), jnp.float32)] * 2,
            scratch_shapes=[pltpu.VMEM((C_blk, 1), jnp.float32)] * 2,
            compiler_params=pltpu.CompilerParams(
                dimension_semantics=("parallel", "parallel", "arbitrary", "arbitrary"),
                vmem_limit_bytes=vmem_limit),
        )(x3)

        # Finalize (Chan's parallel-variance merge + scale/shift): only C scalars, so this
        # stays in plain JAX instead of four masked (C, 1) kernel outputs.
        sum_c = jnp.sum(part_sum, axis=(0, 2))                 # (C,)
        sq_c = jnp.sum(part_sq, axis=(0, 2))
        batch_mean = sum_c / L
        batch_var = jnp.maximum(sq_c / L - batch_mean * batch_mean, 0.0)

        old_count = run_count.astype(jnp.float32)
        new_count = jnp.asarray(float(N), jnp.float32)
        tot = old_count + new_count
        delta = batch_mean - old_mean
        mean = (old_count * old_mean + new_count * batch_mean) / tot
        var = (old_count * old_var + new_count * batch_var
               + delta * delta * (old_count * new_count / tot)) / tot
        new_count_out = run_count + jnp.asarray(N, run_count.dtype)
    else:
        mean, var = old_mean, old_var
        new_count_out = run_count

    scale = lax.rsqrt(jnp.maximum(var, 0.01))
    shift = -mean * scale

    # bf16 inputs: do the normalize in bf16 (bf16 VALU on v6e/v7x); f32 otherwise.
    # TODO(synk): v5e has no bf16 VALU; per-chip forcing of the f32 path is not wired up.
    norm_dtype = x.dtype if x.dtype == jnp.bfloat16 else jnp.float32
    scale2 = scale.reshape(C, 1).astype(norm_dtype)
    shift2 = shift.reshape(C, 1).astype(norm_dtype)

    x_spec = pl.BlockSpec((N_blk, C_blk, T), lambda c, n, t: (n, c, t))
    ch_spec = pl.BlockSpec((C_blk, 1), lambda c, n, t: (c, 0))

    y3 = pl.pallas_call(
        _normalize_kernel,
        grid=(n_c, n_n, n_t),
        in_specs=[x_spec, ch_spec, ch_spec],
        out_specs=x_spec,
        out_shape=jax.ShapeDtypeStruct((N, C, HW), x.dtype),
        compiler_params=pltpu.CompilerParams(
            dimension_semantics=("parallel", "parallel", "parallel"),
            vmem_limit_bytes=vmem_limit),
    )(x3, scale2, shift2)

    y = y3.reshape(N, C, H, W)
    return (y,
            mean.reshape(1, C, 1, 1),
            var.reshape(1, C, 1, 1),
            new_count_out)


# ----------------------------- reference (pure JAX) ------------------------ #

def _reference(x, run_mean, run_var, run_count, training=True):
    N, C, H, W = x.shape
    mean, var, count = run_mean, run_var, run_count
    if training:
        x_cf = jnp.transpose(x, (1, 0, 2, 3)).reshape(C, -1)
        new_mean = jnp.mean(x_cf, axis=-1, keepdims=True)
        new_count = jnp.asarray(N, jnp.float32)
        new_var = jnp.mean((x_cf - new_mean) ** 2, axis=-1, keepdims=True)
        new_mean = new_mean.reshape(1, C, 1, 1)
        new_var = new_var.reshape(1, C, 1, 1)
        m_a = var * count
        m_b = new_var * new_count
        M2 = m_a + m_b + (new_mean - mean) ** 2 * count * new_count / (count + new_count)
        var = M2 / (count + new_count)
        mean = (count * mean + new_count * new_mean) / (count + new_count)
        count = count + new_count
    inv = lax.rsqrt(jnp.maximum(var, 0.01))
    return (-mean * inv) + x * inv, mean, var, count


# ----------------------------- main ---------------------------------------- #

if __name__ == "__main__":
    key = jax.random.PRNGKey(0)
    N, C, H, W = 2, 4, 16, 16
    x = jax.random.normal(key, (N, C, H, W), dtype=jnp.float32) * 2.0 + 0.5

    # buffers as in __init__: zeros
    run_mean = jnp.zeros((1, C, 1, 1), jnp.float32)
    run_var = jnp.zeros((1, C, 1, 1), jnp.float32)
    run_count = jnp.zeros((), jnp.float32)

    # training-mode forward (nn.Module default is training=True)
    y, m1, v1, c1 = running_mean_and_var_forward(x, run_mean, run_var, run_count,
                                                 training=True)
    jax.block_until_ready(y)

    # eval-mode forward with the updated running stats
    y_eval, _, _, _ = running_mean_and_var_forward(x, m1, v1, c1, training=False)
    jax.block_until_ready(y_eval)

    # tiny forced block budget -> exercises the multi-step reduction and the 2-way
    # split axis on these small test shapes
    y_small, m_s, v_s, c_s = running_mean_and_var_forward(
        x, run_mean, run_var, run_count, training=True, block_budget_bytes=2048)
    jax.block_until_ready(y_small)

    # verify against the pure-JAX reference
    y_ref, m_ref, v_ref, c_ref = _reference(x, run_mean, run_var, run_count, True)
    y_eval_ref, _, _, _ = _reference(x, m_ref, v_ref, c_ref, False)

    ok = (jnp.allclose(y, y_ref, atol=1e-4, rtol=1e-4)
          and jnp.allclose(m1, m_ref, atol=1e-5, rtol=1e-5)
          and jnp.allclose(v1, v_ref, atol=1e-4, rtol=1e-4)
          and jnp.allclose(c1, c_ref)
          and jnp.allclose(y_eval, y_eval_ref, atol=1e-4, rtol=1e-4)
          and jnp.allclose(y_small, y_ref, atol=1e-4, rtol=1e-4)
          and jnp.allclose(m_s, m_ref, atol=1e-5, rtol=1e-5)
          and jnp.allclose(v_s, v_ref, atol=1e-4, rtol=1e-4)
          and jnp.allclose(c_s, c_ref))
    if bool(ok):
        print("KERNEL_OK")
    else:
        raise SystemExit("mismatch vs reference")
</pallas_src>

<mosaic_0001>
module attributes {stable_mosaic.version = 11 : i64} {
  func.func @_stats_kernel(%arg0: i32, %arg1: i32, %arg2: i32, %arg3: i32, %arg4: memref<2x4x256xf32, #tpu.memory_space<vmem>>, %arg5: memref<1x4x1xf32, #tpu.memory_space<vmem>>, %arg6: memref<1x4x1xf32, #tpu.memory_space<vmem>>, %arg7: memref<4x1xf32, #tpu.memory_space<vmem>>, %arg8: memref<4x1xf32, #tpu.memory_space<vmem>>) attributes {dimension_semantics = [#tpu.dimension_semantics<parallel>, #tpu.dimension_semantics<parallel>, #tpu.dimension_semantics<arbitrary>, #tpu.dimension_semantics<arbitrary>], iteration_bounds = array<i64: 1, 1, 1, 1>, scalar_prefetch = 0 : i64, scratch_operands = 2 : i64, tpu.core_type = #tpu.core_type<tc>, window_params = [{transform_indices = @transform_0, window_bounds = array<i64: 2, 4, 256>}, {transform_indices = @transform_1, window_bounds = array<i64: 1, 4, 1>}, {transform_indices = @transform_2, window_bounds = array<i64: 1, 4, 1>}]} {
    %c0_i32 = arith.constant 0 : i32
    %0 = arith.cmpi eq, %arg2, %c0_i32 : i32
    %c0_i32_0 = arith.constant 0 : i32
    %1 = arith.cmpi eq, %arg3, %c0_i32_0 : i32
    %2 = arith.andi %0, %1 : i1
    %c0_i32_1 = arith.constant 0 : i32
    %3 = arith.cmpi eq, %arg2, %c0_i32_1 : i32
    %c0_i32_2 = arith.constant 0 : i32
    %4 = arith.cmpi eq, %arg3, %c0_i32_2 : i32
    %5 = arith.andi %3, %4 : i1
    %6 = arith.extui %2 : i1 to i32
    %c0_i32_3 = arith.constant 0 : i32
    %7 = arith.cmpi ne, %6, %c0_i32_3 : i32
    scf.if %7 {
      %cst_20 = arith.constant 0.000000e+00 : f32
      %32 = vector.broadcast %cst_20 : f32 to vector<4x1xf32>
      %c0_21 = arith.constant 0 : index
      %c0_22 = arith.constant 0 : index
      %33 = vector.load %arg7[%c0_21, %c0_22] : memref<4x1xf32, #tpu.memory_space<vmem>>, vector<4x1xf32>
      tpu.vector_store %arg7[%c0_21, %c0_22], %32 {strides = array<i32>} : memref<4x1xf32, #tpu.memory_space<vmem>>, vector<4x1xf32>,
      %cst_23 = arith.constant 0.000000e+00 : f32
      %34 = vector.broadcast %cst_23 : f32 to vector<4x1xf32>
      %c0_24 = arith.constant 0 : index
      %c0_25 = arith.constant 0 : index
      %35 = vector.load %arg8[%c0_24, %c0_25] : memref<4x1xf32, #tpu.memory_space<vmem>>, vector<4x1xf32>
      tpu.vector_store %arg8[%c0_24, %c0_25], %34 {strides = array<i32>} : memref<4x1xf32, #tpu.memory_space<vmem>>, vector<4x1xf32>,
    } else {
    }
    %c0 = arith.constant 0 : index
    %c0_4 = arith.constant 0 : index
    %8 = vector.load %arg7[%c0, %c0_4] : memref<4x1xf32, #tpu.memory_space<vmem>>, vector<4x1xf32>
    %c0_5 = arith.constant 0 : index
    %c0_6 = arith.constant 0 : index
    %9 = vector.load %arg8[%c0_5, %c0_6] : memref<4x1xf32, #tpu.memory_space<vmem>>, vector<4x1xf32>
    %c0_7 = arith.constant 0 : index
    %c0_8 = arith.constant 0 : index
    %c0_9 = arith.constant 0 : index
    %10 = vector.load %arg4[%c0_7, %c0_8, %c0_9] : memref<2x4x256xf32, #tpu.memory_space<vmem>>, vector<1x4x256xf32>
    %11 = vector.shape_cast %10 : vector<1x4x256xf32> to vector<4x256xf32>
    %cst = arith.constant dense<0.000000e+00> : vector<4xf32>
    %12 = vector.multi_reduction <add>, %11, %cst [1] : vector<4x256xf32> to vector<4xf32>
    %13 = vector.shape_cast %12 : vector<4xf32> to vector<4x1xf32>
    %14 = arith.addf %8, %13 : vector<4x1xf32>
    %15 = arith.mulf %11, %11 : vector<4x256xf32>
    %cst_10 = arith.constant dense<0.000000e+00> : vector<4xf32>
    %16 = vector.multi_reduction <add>, %15, %cst_10 [1] : vector<4x256xf32> to vector<4xf32>
    %17 = vector.shape_cast %16 : vector<4xf32> to vector<4x1xf32>
    %18 = arith.addf %9, %17 : vector<4x1xf32>
    %c1 = arith.constant 1 : index
    %c0_11 = arith.constant 0 : index
    %c0_12 = arith.constant 0 : index
    %19 = vector.load %arg4[%c1, %c0_11, %c0_12] : memref<2x4x256xf32, #tpu.memory_space<vmem>>, vector<1x4x256xf32>
    %20 = vector.shape_cast %19 : vector<1x4x256xf32> to vector<4x256xf32>
    %cst_13 = arith.constant dense<0.000000e+00> : vector<4xf32>
    %21 = vector.multi_reduction <add>, %20, %cst_13 [1] : vector<4x256xf32> to vector<4xf32>
    %22 = vector.shape_cast %21 : vector<4xf32> to vector<4x1xf32>
    %23 = arith.addf %14, %22 : vector<4x1xf32>
    %24 = arith.mulf %20, %20 : vector<4x256xf32>
    %cst_14 = arith.constant dense<0.000000e+00> : vector<4xf32>
    %25 = vector.multi_reduction <add>, %24, %cst_14 [1] : vector<4x256xf32> to vector<4xf32>
    %26 = vector.shape_cast %25 : vector<4xf32> to vector<4x1xf32>
    %27 = arith.addf %18, %26 : vector<4x1xf32>
    %c0_15 = arith.constant 0 : index
    %c0_16 = arith.constant 0 : index
    %28 = vector.load %arg7[%c0_15, %c0_16] : memref<4x1xf32, #tpu.memory_space<vmem>>, vector<4x1xf32>
    tpu.vector_store %arg7[%c0_15, %c0_16], %23 {strides = array<i32>} : memref<4x1xf32, #tpu.memory_space<vmem>>, vector<4x1xf32>,
    %c0_17 = arith.constant 0 : index
    %c0_18 = arith.constant 0 : index
    %29 = vector.load %arg8[%c0_17, %c0_18] : memref<4x1xf32, #tpu.memory_space<vmem>>, vector<4x1xf32>
    tpu.vector_store %arg8[%c0_17, %c0_18], %27 {strides = array<i32>} : memref<4x1xf32, #tpu.memory_space<vmem>>, vector<4x1xf32>,
    %30 = arith.extui %5 : i1 to i32
    %c0_i32_19 = arith.constant 0 : i32
    %31 = arith.cmpi ne, %30, %c0_i32_19 : i32
    scf.if %31 {
      %c0_20 = arith.constant 0 : index
      %c0_21 = arith.constant 0 : index
      %c0_22 = arith.constant 0 : index
      %32 = vector.load %arg5[%c0_20, %c0_21, %c0_22] : memref<1x4x1xf32, #tpu.memory_space<vmem>>, vector<1x4x1xf32>
      %33 = vector.shape_cast %32 : vector<1x4x1xf32> to vector<4x1xf32>
      %34 = vector.shape_cast %23 : vector<4x1xf32> to vector<1x4x1xf32>
      tpu.vector_store %arg5[%c0_20, %c0_21, %c0_22], %34 {strides = array<i32>} : memref<1x4x1xf32, #tpu.memory_space<vmem>>, vector<1x4x1xf32>,
      %c0_23 = arith.constant 0 : index
      %c0_24 = arith.constant 0 : index
      %c0_25 = arith.constant 0 : index
      %35 = vector.load %arg6[%c0_23, %c0_24, %c0_25] : memref<1x4x1xf32, #tpu.memory_space<vmem>>, vector<1x4x1xf32>
      %36 = vector.shape_cast %35 : vector<1x4x1xf32> to vector<4x1xf32>
      %37 = vector.shape_cast %27 : vector<4x1xf32> to vector<1x4x1xf32>
      tpu.vector_store %arg6[%c0_23, %c0_24, %c0_25], %37 {strides = array<i32>} : memref<1x4x1xf32, #tpu.memory_space<vmem>>, vector<1x4x1xf32>,
    } else {
    }
    return
  }
  func.func @transform_0(%arg0: i32, %arg1: i32, %arg2: i32, %arg3: i32) -> (i32, i32, i32) {
    %c0_i32 = arith.constant 0 : i32
    return %arg2, %arg1, %arg3 : i32, i32, i32
  }
  func.func @transform_1(%arg0: i32, %arg1: i32, %arg2: i32, %arg3: i32) -> (i32, i32, i32) {
    %c0_i32 = arith.constant 0 : i32
    %c0_i32_0 = arith.constant 0 : i32
    return %arg0, %arg1, %c0_i32 : i32, i32, i32
  }
  func.func @transform_2(%arg0: i32, %arg1: i32, %arg2: i32, %arg3: i32) -> (i32, i32, i32) {
    %c0_i32 = arith.constant 0 : i32
    %c0_i32_0 = arith.constant 0 : i32
    return %arg0, %arg1, %c0_i32 : i32, i32, i32
  }
}

</mosaic_0001>

<llo_original>
// kernel: tpu_custom_call.1
$region0: #{tpu_custom_call.1}
  #allocation0 [shape = 'u32[]', space=smem, size = 0x4, offset = 0x4, fixed_abs, tag = 'smem constant byte address 0x4 - core index']
  #allocation1 [shape = 'u32[72,128]{1,0:T(1,128)}', space=vmem, size = 0x9000, scoped, tag = 'internal scratch']
  #allocation2 [shape = 'f32[4,1]{1,0:T(4,128)}', space=vmem, size = 0x800, scoped, tag = 'scratch operand']
  #allocation3 [shape = 'f32[4,1]{1,0:T(4,128)}', space=vmem, size = 0x800, scoped, tag = 'scratch operand']
  %s0 = inlined_call_operand.hbm [shape: f32[2,4,256], index: 0, kind: input, shape index: {}]
  %s1 = inlined_call_operand.vmem [shape: f32[1,4,1], index: 1, kind: output, shape index: {0}]
  %s2 = inlined_call_operand.vmem [shape: f32[1,4,1], index: 2, kind: output, shape index: {1}]
  %3 = xla_tuple %s1, %s2
  %s4 = sld [smem:[#allocation0]]
  $region34: #{tpu_custom_call.1} parent=0
    _
  %s6 = ssub.s32 1, %s4
  %s7 = scalar_select 0, %s6, %s4
  $region1: #{tpu_custom_call.1} parent=0
    #allocation4 [shape = 'u8[8192]{0}', space=vmem, size = 0x2000, scoped, tag = 'input window, operand 0, single buffered']
    #allocation5 [shape = 's32[1]{0}', space=sflag, size = 0x4, scoped, tag = 'scoped memory for tpu_custom_call.1']
    %8 = vsyncpa [#allocation5], 0
    // Predicated region
    $region2: #{tpu_custom_call.1} parent=1 // pred_check
      _
    $region3: #{tpu_custom_call.1} parent=1 // pred_check_branch
      %10 = sbr.rel (0) target = $region5
    $region4: #{tpu_custom_call.1} parent=1 // pred_region
      %12 = vsyncadd [#allocation5], 0
      %s13 = sshll.u32 %s0, 4
      %s14 = int_to_ptr.hbm [resolvable:$true] %s13
      %s15 = sshll.u32 [#allocation4], 4
      %s16 = int_to_ptr.vmem [resolvable:$true] %s15
      %21 = dma.hbm_to_vmem [thread:$0]  %s14, 256, %s16, [#allocation5], 128, 128, 8
    $region5: #{tpu_custom_call.1} parent=1 // pred_fallthru
      _
    // Predicated region
    $region6: #{tpu_custom_call.1} parent=1 // pred_check
      _
    $region7: #{tpu_custom_call.1} parent=1 // pred_check_branch
      %23 = sbr.rel (0) target = $region9
    $region8: #{tpu_custom_call.1} parent=1 // pred_region
      %25 = dma.done [#allocation5], 256
    $region9: #{tpu_custom_call.1} parent=1 // pred_fallthru
      _
    %p26 = scmp.eq.s32.totalorder 0, 0
    %p27 = scmp.eq.s32.totalorder 0, 0
    %p28 = pnand %p26, %p27
    %p29 = pneg %p28
    // Predicated region
    $region10: #{tpu_custom_call.1} parent=1 // pred_check
      _
    $region11: #{tpu_custom_call.1} parent=1 // pred_check_branch
      %31 = sbr.rel (%p28) target = $region13
    $region12: #{tpu_custom_call.1} parent=1 // pred_region
      %vm32 = vcmask 3072
      %33 = vst.msk [vmem:[#allocation2] sm:$0xf] %vm32, 0.0
      %34 = vst.msk [vmem:[#allocation3] sm:$0xf] %vm32, 0.0
    $region13: #{tpu_custom_call.1} parent=1 // pred_fallthru
      _
    %v35 = vld [vmem:[#allocation2] sm:$0xf]
    %v36 = vld [vmem:[#allocation3] sm:$0xf]
    %v37 = vld [vmem:[#allocation4] sm:$0xff]
    %39 = vst [vmem:[#allocation1] ss:$2 sm:$0xff] %v37
    %v40 = vld.sshfl [vmem:[#allocation1] sm:$0xff pattern:$0x75316420]
    %v41 = vld.sshfl [vmem:[#allocation1 + $0x8] sm:$0xff pattern:$0x75316420]
    %vm44 = vcmask 1043456
    %v45 = vsel %vm44, %v40, 0.0
    %v46 = vsel %vm44, %v41, 0.0
    %v47 = vadd.f32 %v45, %v46
    %48 = vadd.xlane.f32.xlu0 %v47
    %v49 = vpop.xlane.xlu0 %48
    %v50 = vadd.f32 %v35, %v49
    %v51 = vmul.f32 %v37, %v37
    %53 = vst [vmem:[#allocation1] ss:$2 sm:$0xff] %v51
    %v54 = vld.sshfl [vmem:[#allocation1] sm:$0xff pattern:$0x75316420]
    %v55 = vld.sshfl [vmem:[#allocation1 + $0x8] sm:$0xff pattern:$0x75316420]
    %v58 = vsel %vm44, %v54, 0.0
    %v59 = vsel %vm44, %v55, 0.0
    %v60 = vadd.f32 %v58, %v59
    %61 = vadd.xlane.f32.xlu0 %v60
    %v62 = vpop.xlane.xlu0 %61
    %v63 = vadd.f32 %v36, %v62
    %s64 = scalar_lea.vmem [#allocation4], 8
    %v65 = vld [vmem:[%s64] sm:$0xff]
    %67 = vst [vmem:[#allocation1] ss:$2 sm:$0xff] %v65
    %v68 = vld.sshfl [vmem:[#allocation1] sm:$0xff pattern:$0x75316420]
    %v69 = vld.sshfl [vmem:[#allocation1 + $0x8] sm:$0xff pattern:$0x75316420]
    %v72 = vsel %vm44, %v68, 0.0
    %v73 = vsel %vm44, %v69, 0.0
    %v74 = vadd.f32 %v72, %v73
    %75 = vadd.xlane.f32.xlu0 %v74
    %v76 = vpop.xlane.xlu0 %75
    %v77 = vadd.f32 %v50, %v76
    %v78 = vmul.f32 %v65, %v65
    %80 = vst [vmem:[#allocation1] ss:$2 sm:$0xff] %v78
    %v81 = vld.sshfl [vmem:[#allocation1] sm:$0xff pattern:$0x75316420]
    %v82 = vld.sshfl [vmem:[#allocation1 + $0x8] sm:$0xff pattern:$0x75316420]
    %v85 = vsel %vm44, %v81, 0.0
    %v86 = vsel %vm44, %v82, 0.0
    %v87 = vadd.f32 %v85, %v86
    %88 = vadd.xlane.f32.xlu0 %v87
    %v89 = vpop.xlane.xlu0 %88
    %v90 = vadd.f32 %v63, %v89
    %vm91 = vcmask 3072
    %92 = vst.msk [vmem:[#allocation2] sm:$0xf] %vm91, %v77
    %93 = vst.msk [vmem:[#allocation3] sm:$0xf] %vm91, %v90
    // Predicated region
    $region14: #{tpu_custom_call.1} parent=1 // pred_check
      _
    $region15: #{tpu_custom_call.1} parent=1 // pred_check_branch
      %95 = sbr.rel (%p28) target = $region17
    $region16: #{tpu_custom_call.1} parent=1 // pred_region
      %96 = vst.msk [vmem:[%s1] sm:$0xf] %vm91, %v77
      %97 = vst.msk [vmem:[%s2] sm:$0xf] %vm91, %v90
    $region17: #{tpu_custom_call.1} parent=1 // pred_fallthru
      _
    // Predicated region
    $region18: #{tpu_custom_call.1} parent=1 // pred_check
      _
    $region19: #{tpu_custom_call.1} parent=1 // pred_check_branch
      %99 = sbr.rel (0) target = $region21
    $region20: #{tpu_custom_call.1} parent=1 // pred_region
      _
    $region21: #{tpu_custom_call.1} parent=1 // pred_fallthru
      _
    // Predicated region
    $region22: #{tpu_custom_call.1} parent=1 // pred_check
      _
    $region23: #{tpu_custom_call.1} parent=1 // pred_check_branch
      %101 = sbr.rel (0) target = $region25
    $region24: #{tpu_custom_call.1} parent=1 // pred_region
      _
    $region25: #{tpu_custom_call.1} parent=1 // pred_fallthru
      _
    // Predicated region
    $region26: #{tpu_custom_call.1} parent=1 // pred_check
      _
    $region27: #{tpu_custom_call.1} parent=1 // pred_check_branch
      %103 = sbr.rel (0) target = $region29
    $region28: #{tpu_custom_call.1} parent=1 // pred_region
      _
    $region29: #{tpu_custom_call.1} parent=1 // pred_fallthru
      _
    // Predicated region
    $region30: #{tpu_custom_call.1} parent=1 // pred_check
      _
    $region31: #{tpu_custom_call.1} parent=1 // pred_check_branch
      %105 = sbr.rel (0) target = $region33
    $region32: #{tpu_custom_call.1} parent=1 // pred_region
      _
    $region33: #{tpu_custom_call.1} parent=1 // pred_fallthru
      _
    %106 = vsyncpa [#allocation5], 1

</llo_original>
